<compile_context>
chip_gen: v6e
topology: v6e:2x2x1
jax: 0.10.0
libtpu: 0.0.40
codegen_flags: <defaults>
</compile_context>

<pallas_src>
import functools
import math

import jax
import jax.numpy as jnp
from jax import lax
from jax.experimental import pallas as pl
from jax.experimental.pallas import tpu as pltpu


def _round_up(n: int, m: int) -> int:
    return ((n + m - 1) // m) * m


def _sparse_first_layer_kernel(x_ref, w1_ref, w2_ref, o_ref, *, mode):
    # x_ref : (TB, K) f32   activations (natural layout)
    # w1_ref: (H,  K) f32   linear1.weight (natural layout)
    # w2_ref: (O,  H) f32   linear2.weight (natural layout)
    # o_ref : mode-dependent (see below), always lane-dense along the batch
    #         axis unless out_dim >= 128.
    h = lax.dot_general(
        x_ref[...], w1_ref[...],
        dimension_numbers=(((1,), (1,)), ((), ())),     # contract K with K
        preferred_element_type=jnp.float32)              # (TB, H) f32 on MXU
    h = jnp.maximum(h, 0.0)

    if mode == "reduce_t":
        # out_dim == 1: VPU broadcast-multiply + XLU lane reduce; store a
        # (1, TB) lane-dense slab instead of a (TB, 1) column of masked stores.
        hw = h * w2_ref[...]                              # (TB, H)  VPU
        y = jnp.sum(hw, axis=-1, keepdims=True)           # (TB, 1)  lane reduce
        o_ref[...] = y.T.astype(o_ref.dtype)              # (1, TB)  lane-dense
    elif mode == "mxu_t":
        # small out_dim (>1, <128): emit the result transposed (O, TB) so the
        # stored slab is lane-dense along the batch axis.
        y = lax.dot_general(
            w2_ref[...], h,
            dimension_numbers=(((1,), (1,)), ((), ())),    # contract H with H
            preferred_element_type=jnp.float32)            # (O, TB)
        o_ref[...] = y.astype(o_ref.dtype)
    else:  # "mxu": out_dim >= 128 -> (TB, O) is already lane-dense
        y = lax.dot_general(
            h, w2_ref[...],
            dimension_numbers=(((1,), (1,)), ((), ())),
            preferred_element_type=jnp.float32)            # (TB, O)
        o_ref[...] = y.astype(o_ref.dtype)


def sparse_first_layer(x, w1, w2, *, batch_tile=512, grid_batch_threshold=256):
    """x: (B, in_dim); w1: (hidden, in_dim); w2: (out_dim, hidden) -> (B, out_dim)."""
    B, in_dim = x.shape
    hidden_dim, in_dim_w = w1.shape
    out_dim, hidden_w = w2.shape
    assert in_dim_w == in_dim and hidden_w == hidden_dim

    if x.dtype != jnp.float32:
        x = x.astype(jnp.float32)
    if w1.dtype != jnp.float32:
        w1 = w1.astype(jnp.float32)
    if w2.dtype != jnp.float32:
        w2 = w2.astype(jnp.float32)

    if out_dim == 1:
        mode = "reduce_t"
    elif out_dim < 128:
        mode = "mxu_t"
    else:
        mode = "mxu"
    kernel = functools.partial(_sparse_first_layer_kernel, mode=mode)

    cost = pl.CostEstimate(
        flops=2 * B * in_dim * hidden_dim + 2 * B * hidden_dim * out_dim,
        transcendentals=0,
        bytes_accessed=4 * (B * in_dim + hidden_dim * in_dim
                            + out_dim * hidden_dim + B * out_dim))

    if B >= grid_batch_threshold:
        # Large batch: tile rows.  Big tiles amortize the ~0.35 us/step grid
        # overhead, but keep >= 2 grid steps so v7x's two TensorCores can both
        # get work via dimension_semantics=("parallel",).
        tb = min(batch_tile, max(128, _round_up((B + 1) // 2, 128)))
        Bp = _round_up(B, tb)
        x_in = x if Bp == B else jnp.pad(x, ((0, Bp - B), (0, 0)))

        if mode == "reduce_t":
            out_shape = jax.ShapeDtypeStruct((1, Bp), jnp.float32)
            out_spec = pl.BlockSpec((1, tb), lambda i: (0, i))
        elif mode == "mxu_t":
            out_shape = jax.ShapeDtypeStruct((out_dim, Bp), jnp.float32)
            out_spec = pl.BlockSpec((out_dim, tb), lambda i: (0, i))
        else:
            out_shape = jax.ShapeDtypeStruct((Bp, out_dim), jnp.float32)
            out_spec = pl.BlockSpec((tb, out_dim), lambda i: (i, 0))

        out = pl.pallas_call(
            kernel,
            out_shape=out_shape,
            grid=(Bp // tb,),
            in_specs=[
                pl.BlockSpec((tb, in_dim), lambda i: (i, 0)),
                pl.BlockSpec((hidden_dim, in_dim), lambda i: (0, 0)),
                pl.BlockSpec((out_dim, hidden_dim), lambda i: (0, 0)),
            ],
            out_specs=out_spec,
            compiler_params=pltpu.CompilerParams(
                dimension_semantics=("parallel",)),
            cost_estimate=cost,
        )(x_in, w1, w2)

        if mode in ("reduce_t", "mxu_t"):
            return out[:, :B].T          # (B, out_dim)
        return out[:B]

    # Small batch: grid-less, everything VMEM-resident (working set ~tens of
    # KiB; any tiling would just add per-step overhead).
    vmem = pltpu.MemorySpace.VMEM
    if mode == "reduce_t":
        out_shape = jax.ShapeDtypeStruct((1, B), jnp.float32)
    elif mode == "mxu_t":
        out_shape = jax.ShapeDtypeStruct((out_dim, B), jnp.float32)
    else:
        out_shape = jax.ShapeDtypeStruct((B, out_dim), jnp.float32)

    out = pl.pallas_call(
        kernel,
        out_shape=out_shape,
        in_specs=[pl.BlockSpec(memory_space=vmem)] * 3,
        out_specs=pl.BlockSpec(memory_space=vmem),
        cost_estimate=cost,
    )(x, w1, w2)

    if mode in ("reduce_t", "mxu_t"):
        return out.T                     # (B, out_dim)
    return out


# ---------------------------------------------------------------------------
# Deterministic stand-ins for the PyTorch init (nn.Linear + row-wise sparsify).
# ---------------------------------------------------------------------------
def _init_linear(key, out_features, in_features):
    bound = 1.0 / math.sqrt(in_features)
    return jax.random.uniform(key, (out_features, in_features), jnp.float32,
                              -bound, bound)


def _sparsify_rows(key, w, fraction):
    """Zero exactly int(in_dim * (1 - fraction)) random entries per row."""
    out_f, in_f = w.shape
    num_zero = int(in_f * (1.0 - fraction))
    if num_zero <= 0:
        return w
    r = jax.random.uniform(key, (out_f, in_f), jnp.float32)
    thresh = jnp.sort(r, axis=1)[:, num_zero - 1:num_zero]   # (out_f, 1)
    keep = r > thresh                                        # in_f - num_zero kept
    return w * keep


def _ref_forward(x, w1, w2):
    h = jnp.maximum(
        jnp.einsum('bk,hk->bh', x, w1, precision=lax.Precision.HIGHEST), 0.0)
    return jnp.einsum('bh,oh->bo', h, w2, precision=lax.Precision.HIGHEST)


if __name__ == "__main__":
    # Shapes consistent with the module defaults.
    in_dim, hidden_dim, out_dim, fraction = 100, 100, 1, 0.5
    batch = 8

    key = jax.random.PRNGKey(0)
    k_x, k_w1, k_w2, k_sp, k_xl, k_xr = jax.random.split(key, 6)

    w1 = _sparsify_rows(k_sp, _init_linear(k_w1, hidden_dim, in_dim), fraction)
    w2 = _init_linear(k_w2, out_dim, hidden_dim)   # linear2 is NOT sparsified

    # 1) small batch -> grid-less VMEM-resident kernel, VPU-reduce epilogue,
    #    lane-dense (1, B) writeback.  f32 end to end.
    x = jax.random.normal(k_x, (batch, in_dim), jnp.float32)
    out = jax.block_until_ready(sparse_first_layer(x, w1, w2))
    assert out.shape == (batch, out_dim)
    assert jnp.allclose(out, _ref_forward(x, w1, w2), atol=1e-4, rtol=1e-4)

    # 2) large batch -> batch grid (>= 2 steps, parallel semantics).
    xl = jax.random.normal(k_xl, (512, in_dim), jnp.float32)
    out_l = jax.block_until_ready(sparse_first_layer(xl, w1, w2))
    assert out_l.shape == (512, out_dim)
    assert jnp.allclose(out_l, _ref_forward(xl, w1, w2), atol=1e-4, rtol=1e-4)

    # 3) ragged large batch exercises the conditional row-pad path.
    xr = jax.random.normal(k_xr, (300, in_dim), jnp.float32)
    out_r = jax.block_until_ready(sparse_first_layer(xr, w1, w2))
    assert out_r.shape == (300, out_dim)
    assert jnp.allclose(out_r, _ref_forward(xr, w1, w2), atol=1e-4, rtol=1e-4)

    # 4) small out_dim > 1 exercises the transposed (O, tb) MXU path.
    w2m = _init_linear(jax.random.PRNGKey(7), 4, hidden_dim)
    out_m = jax.block_until_ready(sparse_first_layer(x, w1, w2m))
    assert out_m.shape == (batch, 4)
    assert jnp.allclose(out_m, _ref_forward(x, w1, w2m), atol=1e-4, rtol=1e-4)

    out_ml = jax.block_until_ready(sparse_first_layer(xl, w1, w2m))
    assert out_ml.shape == (512, 4)
    assert jnp.allclose(out_ml, _ref_forward(xl, w1, w2m), atol=1e-4, rtol=1e-4)

    # TODO(synk): normalized_margin() is an auxiliary training metric, not part
    # of forward(); it is left to plain JAX (norm of params + min reduction).
    print("KERNEL_OK")
</pallas_src>

<mosaic_0001>
module attributes {stable_mosaic.version = 11 : i64} {
  func.func @_sparse_first_layer_kernel(%arg0: memref<8x100xf32, #tpu.memory_space<vmem>>, %arg1: memref<100x100xf32, #tpu.memory_space<vmem>>, %arg2: memref<1x100xf32, #tpu.memory_space<vmem>>, %arg3: memref<1x8xf32, #tpu.memory_space<vmem>>) attributes {dimension_semantics = [], scalar_prefetch = 0 : i64, scratch_operands = 0 : i64, tpu.core_type = #tpu.core_type<tc>} {
    %c0 = arith.constant 0 : index
    %c0_0 = arith.constant 0 : index
    %0 = vector.load %arg0[%c0, %c0_0] : memref<8x100xf32, #tpu.memory_space<vmem>>, vector<8x100xf32>
    %c0_1 = arith.constant 0 : index
    %c0_2 = arith.constant 0 : index
    %1 = vector.load %arg1[%c0_1, %c0_2] : memref<100x100xf32, #tpu.memory_space<vmem>>, vector<100x100xf32>
    %cst = arith.constant dense<0.000000e+00> : vector<8x100xf32>
    %2 = tpu.matmul %0, %1, %cst {dimension_numbers = #tpu.dot_dimension_numbers<[1], [1], [0], [0], [0, 0, 1, 0], [], []>} : vector<8x100xf32>, vector<100x100xf32>, vector<8x100xf32> -> vector<8x100xf32>
    %cst_3 = arith.constant 0.000000e+00 : f32
    %3 = vector.broadcast %cst_3 : f32 to vector<8x100xf32>
    %4 = arith.maximumf %2, %3 : vector<8x100xf32>
    %c0_4 = arith.constant 0 : index
    %c0_5 = arith.constant 0 : index
    %5 = vector.load %arg2[%c0_4, %c0_5] : memref<1x100xf32, #tpu.memory_space<vmem>>, vector<1x100xf32>
    %6 = vector.broadcast %5 : vector<1x100xf32> to vector<8x100xf32>
    %7 = arith.mulf %4, %6 : vector<8x100xf32>
    %cst_6 = arith.constant dense<0.000000e+00> : vector<8xf32>
    %8 = vector.multi_reduction <add>, %7, %cst_6 [1] : vector<8x100xf32> to vector<8xf32>
    %9 = vector.shape_cast %8 : vector<8xf32> to vector<8x1xf32>
    %10 = tpu.transpose %9, [1, 0] : vector<8x1xf32> -> vector<1x8xf32>
    %c0_7 = arith.constant 0 : index
    %c0_8 = arith.constant 0 : index
    %11 = vector.load %arg3[%c0_7, %c0_8] : memref<1x8xf32, #tpu.memory_space<vmem>>, vector<1x8xf32>
    tpu.vector_store %arg3[%c0_7, %c0_8], %10 {strides = array<i32>} : memref<1x8xf32, #tpu.memory_space<vmem>>, vector<1x8xf32>,
    return
  }
}

</mosaic_0001>

<llo_original>
// kernel: tpu_custom_call.1
$region0: #{tpu_custom_call.1}
  #allocation0 [shape = 'u32[]', space=smem, size = 0x4, offset = 0x4, fixed_abs, tag = 'smem constant byte address 0x4 - core index']
  #allocation1 [shape = 'u32[144,128]{1,0:T(1,128)}', space=vmem, size = 0x12000, scoped, tag = 'internal scratch']
  %s0 = inlined_call_operand.hbm [shape: f32[8,100], index: 0, kind: input, shape index: {}]
  %s1 = inlined_call_operand.hbm [shape: f32[100,100], index: 1, kind: input, shape index: {}]
  %s2 = inlined_call_operand.vmem [shape: f32[1,100], index: 2, kind: input, shape index: {}]
  %s3 = inlined_call_operand.hbm [shape: f32[1,8], index: 3, kind: output, shape index: {}]
  %s4 = sld [smem:[#allocation0]]
  $region30: #{tpu_custom_call.1} parent=0
    _
  %s6 = ssub.s32 1, %s4
  %s7 = scalar_select 0, %s6, %s4
  $region1: #{tpu_custom_call.1} parent=0
    #allocation2 [shape = 'u8[4096]{0}', space=vmem, size = 0x1000, scoped, tag = 'input window, operand 0, single buffered']
    #allocation3 [shape = 's32[1]{0}', space=sflag, size = 0x4, scoped, tag = 'scoped memory for tpu_custom_call.1']
    #allocation4 [shape = 's32[1]{0}', space=sflag, size = 0x4, scoped, tag = 'scoped memory for tpu_custom_call.1']
    #allocation5 [shape = 'u8[53248]{0}', space=vmem, size = 0xd000, scoped, tag = 'input window, operand 1, single buffered']
    #allocation6 [shape = 's32[1]{0}', space=sflag, size = 0x4, scoped, tag = 'scoped memory for tpu_custom_call.1']
    #allocation7 [shape = 'u8[512]{0}', space=vmem, size = 0x400, scoped, tag = 'output window, operand 0, single buffered']
    %8 = vsyncpa [#allocation3], 0
    %9 = vsyncpa [#allocation6], 0
    %10 = vsyncpa [#allocation4], 0
    // Predicated region
    $region2: #{tpu_custom_call.1} parent=1 // pred_check
      _
    $region3: #{tpu_custom_call.1} parent=1 // pred_check_branch
      %12 = sbr.rel (0) target = $region5
    $region4: #{tpu_custom_call.1} parent=1 // pred_region
      %s14 = ssub.s32 128, 128
      %15 = vsyncadd [#allocation3], %s14
      %s17 = sshll.u32 [#allocation2], 4
      %s18 = int_to_ptr.vmem [resolvable:$true] %s17
      %20 = dma.hbm_to_vmem [thread:$0]  %s0, 128, %s18, [#allocation3]
    $region5: #{tpu_custom_call.1} parent=1 // pred_fallthru
      _
    // Predicated region
    $region6: #{tpu_custom_call.1} parent=1 // pred_check
      _
    $region7: #{tpu_custom_call.1} parent=1 // pred_check_branch
      %22 = sbr.rel (0) target = $region9
    $region8: #{tpu_custom_call.1} parent=1 // pred_region
      %s24 = ssub.s32 1664, 1664
      %25 = vsyncadd [#allocation6], %s24
      %s26 = sshll.u32 [#allocation5], 4
      %s27 = int_to_ptr.vmem [resolvable:$true] %s26
      %32 = dma.hbm_to_vmem [thread:$0]  %s1, 1664, %s27, [#allocation6], 128, 128, 8
    $region9: #{tpu_custom_call.1} parent=1 // pred_fallthru
      _
    // Predicated region
    $region10: #{tpu_custom_call.1} parent=1 // pred_check
      _
    $region11: #{tpu_custom_call.1} parent=1 // pred_check_branch
      %34 = sbr.rel (0) target = $region13
    $region12: #{tpu_custom_call.1} parent=1 // pred_region
      _
    $region13: #{tpu_custom_call.1} parent=1 // pred_fallthru
      _
    // Predicated region
    $region14: #{tpu_custom_call.1} parent=1 // pred_check
      _
    $region15: #{tpu_custom_call.1} parent=1 // pred_check_branch
      %36 = sbr.rel (0) target = $region17
    $region16: #{tpu_custom_call.1} parent=1 // pred_region
      %37 = dma.done [#allocation3], 128
    $region17: #{tpu_custom_call.1} parent=1 // pred_fallthru
      _
    // Predicated region
    $region18: #{tpu_custom_call.1} parent=1 // pred_check
      _
    $region19: #{tpu_custom_call.1} parent=1 // pred_check_branch
      %39 = sbr.rel (0) target = $region21
    $region20: #{tpu_custom_call.1} parent=1 // pred_region
      %40 = dma.done [#allocation6], 1664
    $region21: #{tpu_custom_call.1} parent=1 // pred_fallthru
      _
    %v41 = vld [vmem:[#allocation2] sm:$0xff]
    %v42 = vld [vmem:[#allocation5] sm:$0xff]
    %v43 = vld [vmem:[#allocation5 + $0x8] sm:$0xff]
    %v44 = vld [vmem:[#allocation5 + $0x10] sm:$0xff]
    %v45 = vld [vmem:[#allocation5 + $0x18] sm:$0xff]
    %v46 = vld [vmem:[#allocation5 + $0x20] sm:$0xff]
    %v47 = vld [vmem:[#allocation5 + $0x28] sm:$0xff]
    %v48 = vld [vmem:[#allocation5 + $0x30] sm:$0xff]
    %v49 = vld [vmem:[#allocation5 + $0x38] sm:$0xff]
    %v50 = vld [vmem:[#allocation5 + $0x40] sm:$0xff]
    %v51 = vld [vmem:[#allocation5 + $0x48] sm:$0xff]
    %v52 = vld [vmem:[#allocation5 + $0x50] sm:$0xff]
    %v53 = vld [vmem:[#allocation5 + $0x58] sm:$0xff]
    %v54 = vld [vmem:[#allocation5 + $0x60] sm:$0xf]
    %vm55 = vcmask 818176
    %v57 = vsel %vm55, %v41, 0
    %v60 = vsel %vm55, %v42, 0
    %v63 = vsel %vm55, %v43, 0
    %v66 = vsel %vm55, %v44, 0
    %v69 = vsel %vm55, %v45, 0
    %v72 = vsel %vm55, %v46, 0
    %v75 = vsel %vm55, %v47, 0
    %v78 = vsel %vm55, %v48, 0
    %v81 = vsel %vm55, %v49, 0
    %v84 = vsel %vm55, %v50, 0
    %v87 = vsel %vm55, %v51, 0
    %v90 = vsel %vm55, %v52, 0
    %v93 = vsel %vm55, %v53, 0
    %v96 = vsel %vm55, %v54, 0
    %98 = vmatprep.subr.mxu0 0.0
    %99 = vmatpush1.xpose.msra.mxu0 0.0
    %100 = vmatprep.subr.mxu0 0.0
    %101 = vmatpush1.xpose.msra.mxu0 0.0
    %102 = vmatprep.subr.mxu0 0.0
    %103 = vmatpush1.xpose.msra.mxu0 0.0
    %104 = vmatprep.subr.mxu0 0.0
    %105 = vmatpush1.xpose.msra.mxu0 %v96
    %106 = vmatprep.subr.mxu0 0.0
    %107 = vmatpush1.xpose.msra.mxu0 %v93
    %108 = vmatprep.subr.mxu0 0.0
    %109 = vmatpush1.xpose.msra.mxu0 %v90
    %110 = vmatprep.subr.mxu0 0.0
    %111 = vmatpush1.xpose.msra.mxu0 %v87
    %112 = vmatprep.subr.mxu0 0.0
    %113 = vmatpush1.xpose.msra.mxu0 %v84
    %114 = vmatprep.subr.mxu0 0.0
    %115 = vmatpush1.xpose.msra.mxu0 %v81
    %116 = vmatprep.subr.mxu0 0.0
    %117 = vmatpush1.xpose.msra.mxu0 %v78
    %118 = vmatprep.subr.mxu0 0.0
    %119 = vmatpush1.xpose.msra.mxu0 %v75
    %120 = vmatprep.subr.mxu0 0.0
    %121 = vmatpush1.xpose.msra.mxu0 %v72
    %122 = vmatprep.subr.mxu0 0.0
    %123 = vmatpush1.xpose.msra.mxu0 %v69
    %124 = vmatprep.subr.mxu0 0.0
    %125 = vmatpush1.xpose.msra.mxu0 %v66
    %126 = vmatprep.subr.mxu0 0.0
    %127 = vmatpush1.xpose.msra.mxu0 %v63
    %128 = vmatprep.subr.mxu0 0.0
    %129 = vmatpush1.xpose.msra.mxu0 %v60
    %130 = vmatprep.subr.mxu0 0.0
    %131 = vmatpush2.xpose.msra.mxu0 0.0
    %132 = vmatprep.subr.mxu0 0.0
    %133 = vmatpush2.xpose.msra.mxu0 0.0
    %134 = vmatprep.subr.mxu0 0.0
    %135 = vmatpush2.xpose.msra.mxu0 0.0
    %136 = vmatprep.subr.mxu0 0.0
    %137 = vmatpush2.xpose.msra.mxu0 0.0
    %138 = vmatprep.subr.mxu0 0.0
    %139 = vmatpush2.xpose.msra.mxu0 0.0
    %140 = vmatprep.subr.mxu0 0.0
    %141 = vmatpush2.xpose.msra.mxu0 0.0
    %142 = vmatprep.subr.mxu0 0.0
    %143 = vmatpush2.xpose.msra.mxu0 0.0
    %144 = vmatprep.subr.mxu0 0.0
    %145 = vmatpush2.xpose.msra.mxu0 0.0
    %146 = vmatprep.subr.mxu0 0.0
    %147 = vmatpush2.xpose.msra.mxu0 0.0
    %148 = vmatprep.subr.mxu0 0.0
    %149 = vmatpush2.xpose.msra.mxu0 0.0
    %150 = vmatprep.subr.mxu0 0.0
    %151 = vmatpush2.xpose.msra.mxu0 0.0
    %152 = vmatprep.subr.mxu0 0.0
    %153 = vmatpush2.xpose.msra.mxu0 0.0
    %154 = vmatprep.subr.mxu0 0.0
    %155 = vmatpush2.xpose.msra.mxu0 0.0
    %156 = vmatprep.subr.mxu0 0.0
    %157 = vmatpush2.xpose.msra.mxu0 0.0
    %158 = vmatprep.subr.mxu0 0.0
    %159 = vmatpush2.xpose.msra.mxu0 0.0
    %160 = vmatprep.subr.mxu0 0.0
    %161 = vmatpush2.xpose.msra.mxu0 0.0
    %162 = vmatprep.mubr.f32.mxu0 0.0
    %163 = vmatmul.mubr.f32.gmra.mxu0 %v57
    %v164 = vpop.f32.mrf.mxu0
    %v165 = vadd.f32 0.0, %v164
    %v166 = vpop.f32.mrf.mxu0
    %167 = vdwg.mxu0
    %v168 = vmax.f32 %v165, 0.0
    %v169 = vld [vmem:[%s2] sm:$0x1]
    %v171 = vlaneseq
    %v172 = vshrl.u32 %v171, 7
    %v173 = vsub.s32 0, %v172
    %v174 = vrot.slane %v169, %v173
    %v176 = vmul.f32 %v168, %v174
    %v177 = vsel %vm55, %v176, 0.0
    %178 = vadd.xlane.f32.xlu0 %v177
    %v179 = vpop.xlane.xlu0 %178
    %180 = vxpose.xlu0.b32.start [1/16] %v179, 128
    %181 = vxpose.xlu0.b32.cont [2/16] 0.0, 128
    %182 = vxpose.xlu0.b32.cont [3/16] 0.0, 128
    %183 = vxpose.xlu0.b32.cont [4/16] 0.0, 128
    %184 = vxpose.xlu0.b32.cont [5/16] 0.0, 128
    %185 = vxpose.xlu0.b32.cont [6/16] 0.0, 128
    %186 = vxpose.xlu0.b32.cont [7/16] 0.0, 128
    %187 = vxpose.xlu0.b32.cont [8/16] 0.0, 128
    %188 = vxpose.xlu0.b32.cont [9/16] 0.0, 128
    %189 = vxpose.xlu0.b32.cont [10/16] 0.0, 128
    %190 = vxpose.xlu0.b32.cont [11/16] 0.0, 128
    %191 = vxpose.xlu0.b32.cont [12/16] 0.0, 128
    %192 = vxpose.xlu0.b32.cont [13/16] 0.0, 128
    %193 = vxpose.xlu0.b32.cont [14/16] 0.0, 128
    %194 = vxpose.xlu0.b32.cont [15/16] 0.0, 128
    %195 = vxpose.xlu0.b32.end [16/16] 0.0, 128
    %v196 = vpop.trf.xlu0
    %v197 = vpop.trf.xlu0
    %v198 = vpop.trf.xlu0
    %v199 = vpop.trf.xlu0
    %v200 = vpop.trf.xlu0
    %v201 = vpop.trf.xlu0
    %v202 = vpop.trf.xlu0
    %v203 = vpop.trf.xlu0
    %v204 = vpop.trf.xlu0
    %v205 = vpop.trf.xlu0
    %v206 = vpop.trf.xlu0
    %v207 = vpop.trf.xlu0
    %v208 = vpop.trf.xlu0
    %v209 = vpop.trf.xlu0
    %v210 = vpop.trf.xlu0
    %v211 = vpop.trf.xlu0
    %vm212 = vcmask 57344
    %213 = vst.msk [vmem:[#allocation7] sm:$0x1] %vm212, %v196
    // Predicated region
    $region22: #{tpu_custom_call.1} parent=1 // pred_check
      _
    $region23: #{tpu_custom_call.1} parent=1 // pred_check_branch
      %215 = sbr.rel (0) target = $region25
    $region24: #{tpu_custom_call.1} parent=1 // pred_region
      %s217 = ssub.s32 16, 16
      %218 = vsyncadd [#allocation4], %s217
      %s220 = sshll.u32 [#allocation7], 4
      %s221 = int_to_ptr.vmem [resolvable:$true] %s220
      %223 = dma.vmem_to_hbm [thread:$0]  %s221, 16, %s3, [#allocation4]
    $region25: #{tpu_custom_call.1} parent=1 // pred_fallthru
      _
    // Predicated region
    $region26: #{tpu_custom_call.1} parent=1 // pred_check
      _
    $region27: #{tpu_custom_call.1} parent=1 // pred_check_branch
      %225 = sbr.rel (0) target = $region29
    $region28: #{tpu_custom_call.1} parent=1 // pred_region
      %226 = dma.done [#allocation4], 16
    $region29: #{tpu_custom_call.1} parent=1 // pred_fallthru
      _
    %227 = vsyncpa [#allocation3], 1
    %228 = vsyncpa [#allocation6], 1
    %229 = vsyncpa [#allocation4], 1

</llo_original>
